<compile_context>
chip_gen: v7x
topology: tpu7x:2x2x1
jax: 0.10.0
libtpu: 0.0.40
codegen_flags: <defaults>
</compile_context>

<pallas_src>
import functools

import jax
import jax.numpy as jnp
import numpy as np
from jax import lax
from jax.experimental import pallas as pl
from jax.experimental.pallas import tpu as pltpu

P_DROP = 0.2
EPS = 1e-5

IN_FEATURES = 28 * 28   # 784
HIDDEN = 100
OUT_FEATURES = 10

HID_PAD = 128
OUT_PAD = 128

# 10-bit dropout field: drop if field < 205  -> keep prob = 819/1024 ~= 0.7998 (vs exact 0.8).
_DROP_CUTOFF = 205
_INV_KEEP = 1.0 / (1.0 - P_DROP)     # 1.25, PyTorch's inverted-dropout scale


def _round_up(x, m):
    return (x + m - 1) // m * m


def _cdiv(a, b):
    return -(-a // b)


def _pick_tb(bsize):
    """Batch tile: multiple of 8, capped at 1024 rows; >=2 grid steps for larger batches
    so both v7x TensorCores get work under dimension_semantics=("parallel",)."""
    b8 = _round_up(max(bsize, 1), 8)
    if b8 <= 8:
        return 8
    return min(1024, _round_up(_cdiv(b8, 2), 8))


def mlp_kernel(seed_ref, x_ref, w1_ref, w2_ref, w3_ref, w4_ref, vec_ref, out_ref, *, training):
    tb = x_ref.shape[0]   # static rows in this batch tile

    # Packed (16, 128) table: rows 0..9 = b1,g1,be1, b2,g2,be2, b3,g3,be3, b4 (zero-padded lanes).
    vecs = vec_ref[...]
    b1, g1, be1 = vecs[0:1], vecs[1:2], vecs[2:3]
    b2, g2, be2 = vecs[3:4], vecs[4:5], vecs[5:6]
    b3, g3, be3 = vecs[6:7], vecs[7:8], vecs[8:9]
    b4 = vecs[9:10]

    if training:
        # Counter-based hash, computed ONCE per (global row, col); per-layer masks come from
        # disjoint 10-bit fields of the same 32-bit hash.
        seed = seed_ref[0]                                                  # uint32 scalar
        row0 = pl.program_id(0) * tb
        rows = (lax.broadcasted_iota(jnp.int32, (tb, HID_PAD), 0) + row0).astype(jnp.uint32)
        cols = lax.broadcasted_iota(jnp.int32, (tb, HID_PAD), 1).astype(jnp.uint32)
        h32 = rows * jnp.uint32(0x9E3779B1) + cols * jnp.uint32(0x85EBCA77)
        h32 = h32 ^ seed
        h32 = h32 ^ (h32 >> 16)
        h32 = h32 * jnp.uint32(0x7FEB352D)
        h32 = h32 ^ (h32 >> 15)
        h32 = h32 * jnp.uint32(0x846CA68B)
        h32 = h32 ^ (h32 >> 16)
    else:
        h32 = None

    def dropout(h, layer):
        if not training:
            return h
        shift = 10 * (layer - 1)
        field = (h32 >> jnp.uint32(shift)) & jnp.uint32(0x3FF)
        keep = field >= jnp.uint32(_DROP_CUTOFF)
        return jnp.where(keep, h * _INV_KEEP, 0.0)

    def layer_norm(h, gamma, beta):
        # One-pass moments over the 100 real features; padded lanes of h are exactly 0 so they
        # contribute nothing to either sum.  gamma/beta are 0 in padded lanes -> output stays 0.
        s1 = jnp.sum(h, axis=-1, keepdims=True)
        s2 = jnp.sum(h * h, axis=-1, keepdims=True)
        mu = s1 * (1.0 / HIDDEN)
        var = jnp.maximum(s2 * (1.0 / HIDDEN) - mu * mu, 0.0)
        return (h - mu) * lax.rsqrt(var + EPS) * gamma + beta

    xb = x_ref[...].astype(jnp.bfloat16)                                    # (tb, 784)
    h = jnp.dot(xb, w1_ref[...], preferred_element_type=jnp.float32) + b1
    h = dropout(jnp.maximum(layer_norm(h, g1, be1), 0.0), 1)

    h = jnp.dot(h.astype(jnp.bfloat16), w2_ref[...],
                preferred_element_type=jnp.float32) + b2
    h = dropout(jnp.maximum(layer_norm(h, g2, be2), 0.0), 2)

    h = jnp.dot(h.astype(jnp.bfloat16), w3_ref[...],
                preferred_element_type=jnp.float32) + b3
    h = dropout(jnp.maximum(layer_norm(h, g3, be3), 0.0), 3)

    out_ref[...] = (jnp.dot(h.astype(jnp.bfloat16), w4_ref[...],
                            preferred_element_type=jnp.float32) + b4)


def prepare_params(params):
    """One-time prep (hoisted out of the per-call path): pad weights to lane-aligned widths and
    cast to bf16; pack all bias/gamma/beta vectors into a single (16, 128) f32 table."""
    (w1, b1, g1, be1, w2, b2, g2, be2, w3, b3, g3, be3, w4, b4) = params

    def padw(w, rows, cols):
        out = jnp.zeros((rows, cols), jnp.bfloat16)
        return out.at[:w.shape[0], :w.shape[1]].set(w.astype(jnp.bfloat16))

    vecs = jnp.zeros((16, HID_PAD), jnp.float32)
    for i, v in enumerate([b1, g1, be1, b2, g2, be2, b3, g3, be3, b4]):
        vecs = vecs.at[i, :v.shape[1]].set(v[0].astype(jnp.float32))

    return (padw(w1, IN_FEATURES, HID_PAD),
            padw(w2, HID_PAD, HID_PAD),
            padw(w3, HID_PAD, HID_PAD),
            padw(w4, HID_PAD, OUT_PAD),
            vecs)


@functools.partial(jax.jit, static_argnames=("training",))
def _forward(x, seed_arr, w1, w2, w3, w4, vecs, *, training):
    bsize = x.shape[0]
    x2d = x.reshape(bsize, -1).astype(jnp.float32)                          # (B, 784)

    tb = _pick_tb(bsize)
    b_pad = _round_up(bsize, tb)
    if b_pad != bsize:
        # Corner case only (batch not a multiple of the tile): pad with zero rows.
        x2d = jnp.pad(x2d, ((0, b_pad - bsize), (0, 0)))

    vmem = pl.BlockSpec(memory_space=pltpu.MemorySpace.VMEM)   # resident across grid steps
    smem = pl.BlockSpec(memory_space=pltpu.MemorySpace.SMEM)

    kernel = functools.partial(mlp_kernel, training=training)
    out = pl.pallas_call(
        kernel,
        out_shape=jax.ShapeDtypeStruct((b_pad, OUT_PAD), jnp.float32),
        grid=(b_pad // tb,),
        in_specs=[smem,
                  pl.BlockSpec((tb, IN_FEATURES), lambda i: (i, 0)),
                  vmem, vmem, vmem, vmem, vmem],
        out_specs=pl.BlockSpec((tb, OUT_PAD), lambda i: (i, 0)),
        compiler_params=pltpu.CompilerParams(
            dimension_semantics=("parallel",),
            vmem_limit_bytes=32 * 1024 * 1024),
    )(seed_arr, x2d, w1, w2, w3, w4, vecs)

    return out[:bsize, :OUT_FEATURES]


def mlp_dropout_layernorm(x, prepared_params, *, seed=0, training=True):
    """x: (B, 1, 28, 28) float32 (NCHW, like PyTorch). Returns (B, 10) float32."""
    seed_arr = jnp.asarray([seed & 0xFFFFFFFF], dtype=jnp.uint32)
    return _forward(x, seed_arr, *prepared_params, training=training)


def init_params(key):
    """Deterministic init mirroring the PyTorch module's shapes.
    Linear weights stored pre-transposed as (in, out); biases/gammas/betas as (1, out)."""
    dims = [(IN_FEATURES, HIDDEN), (HIDDEN, HIDDEN), (HIDDEN, HIDDEN), (HIDDEN, OUT_FEATURES)]
    params = []
    for i, (fan_in, fan_out) in enumerate(dims):
        key, kw, kb = jax.random.split(key, 3)
        bound = 1.0 / np.sqrt(fan_in)
        w = jax.random.uniform(kw, (fan_in, fan_out), jnp.float32, -bound, bound)
        b = jax.random.uniform(kb, (1, fan_out), jnp.float32, -bound, bound)
        params += [w, b]
        if i < 3:  # LayerNorm affine params (gamma=1, beta=0 like PyTorch init)
            params += [jnp.ones((1, fan_out), jnp.float32),
                       jnp.zeros((1, fan_out), jnp.float32)]
    return params


def reference_eval(x, params):
    """Plain-JAX reference (dropout disabled), same bf16-matmul / f32-elementwise scheme."""
    (w1, b1, g1, be1, w2, b2, g2, be2, w3, b3, g3, be3, w4, b4) = params
    h = x.reshape(x.shape[0], -1).astype(jnp.float32)

    def ln(h, g, be):
        mu = jnp.mean(h, axis=-1, keepdims=True)
        var = jnp.mean((h - mu) ** 2, axis=-1, keepdims=True)
        return (h - mu) * lax.rsqrt(var + EPS) * g + be

    for w, b, g, be in [(w1, b1, g1, be1), (w2, b2, g2, be2), (w3, b3, g3, be3)]:
        h = jnp.dot(h.astype(jnp.bfloat16), w.astype(jnp.bfloat16),
                    preferred_element_type=jnp.float32) + b
        h = jnp.maximum(ln(h, g, be), 0.0)
    return jnp.dot(h.astype(jnp.bfloat16), w4.astype(jnp.bfloat16),
                   preferred_element_type=jnp.float32) + b4


if __name__ == "__main__":
    key = jax.random.PRNGKey(0)
    kx, kp = jax.random.split(key)

    B = 2
    x = jax.random.normal(kx, (B, 1, 28, 28), dtype=jnp.float32)   # NCHW input
    params = init_params(kp)
    prepared = prepare_params(params)                              # once per parameter set

    # Eval-mode run (dropout = identity): check against plain-JAX reference.
    out_eval = jax.block_until_ready(
        mlp_dropout_layernorm(x, prepared, seed=0, training=False))
    ref = jax.block_until_ready(reference_eval(x, params))
    np.testing.assert_allclose(np.asarray(out_eval), np.asarray(ref),
                               rtol=5e-3, atol=5e-3)

    # Training-mode run (dropout active, matching PyTorch's default module mode).
    out_train = jax.block_until_ready(
        mlp_dropout_layernorm(x, prepared, seed=1234, training=True))

    assert out_eval.shape == (B, 10) and out_train.shape == (B, 10)
    assert bool(jnp.all(jnp.isfinite(out_train)))
    print("KERNEL_OK")
</pallas_src>

<mosaic_0001>
module attributes {stable_mosaic.version = 11 : i64} {
  func.func @mlp_kernel(%arg0: i32, %arg1: memref<1xi32, #tpu.memory_space<smem>>, %arg2: memref<8x784xf32, #tpu.memory_space<vmem>>, %arg3: memref<784x128xbf16, #tpu.memory_space<vmem>>, %arg4: memref<128x128xbf16, #tpu.memory_space<vmem>>, %arg5: memref<128x128xbf16, #tpu.memory_space<vmem>>, %arg6: memref<128x128xbf16, #tpu.memory_space<vmem>>, %arg7: memref<16x128xf32, #tpu.memory_space<vmem>>, %arg8: memref<8x128xf32, #tpu.memory_space<vmem>>) attributes {dimension_semantics = [#tpu.dimension_semantics<parallel>], iteration_bounds = array<i64: 1>, scalar_prefetch = 0 : i64, scratch_operands = 0 : i64, tpu.core_type = #tpu.core_type<tc>, window_params = [{transform_indices = @transform_0, window_bounds = array<i64: 1>}, {transform_indices = @transform_1, window_bounds = array<i64: 8, 784>}, {pipeline_mode = #tpu.pipeline_mode<synchronous>, transform_indices = @transform_2, window_bounds = array<i64: 784, 128>}, {pipeline_mode = #tpu.pipeline_mode<synchronous>, transform_indices = @transform_3, window_bounds = array<i64: 128, 128>}, {pipeline_mode = #tpu.pipeline_mode<synchronous>, transform_indices = @transform_4, window_bounds = array<i64: 128, 128>}, {pipeline_mode = #tpu.pipeline_mode<synchronous>, transform_indices = @transform_5, window_bounds = array<i64: 128, 128>}, {pipeline_mode = #tpu.pipeline_mode<synchronous>, transform_indices = @transform_6, window_bounds = array<i64: 16, 128>}, {transform_indices = @transform_7, window_bounds = array<i64: 8, 128>}]} {
    %c0 = arith.constant 0 : index
    %c0_0 = arith.constant 0 : index
    %0 = vector.load %arg7[%c0, %c0_0] : memref<16x128xf32, #tpu.memory_space<vmem>>, vector<16x128xf32>
    %1 = vector.extract_strided_slice %0 {offsets = [0, 0], sizes = [1, 128], strides = [1, 1]} : vector<16x128xf32> to vector<1x128xf32>
    %2 = vector.extract_strided_slice %0 {offsets = [1, 0], sizes = [1, 128], strides = [1, 1]} : vector<16x128xf32> to vector<1x128xf32>
    %3 = vector.extract_strided_slice %0 {offsets = [2, 0], sizes = [1, 128], strides = [1, 1]} : vector<16x128xf32> to vector<1x128xf32>
    %4 = vector.extract_strided_slice %0 {offsets = [3, 0], sizes = [1, 128], strides = [1, 1]} : vector<16x128xf32> to vector<1x128xf32>
    %5 = vector.extract_strided_slice %0 {offsets = [4, 0], sizes = [1, 128], strides = [1, 1]} : vector<16x128xf32> to vector<1x128xf32>
    %6 = vector.extract_strided_slice %0 {offsets = [5, 0], sizes = [1, 128], strides = [1, 1]} : vector<16x128xf32> to vector<1x128xf32>
    %7 = vector.extract_strided_slice %0 {offsets = [6, 0], sizes = [1, 128], strides = [1, 1]} : vector<16x128xf32> to vector<1x128xf32>
    %8 = vector.extract_strided_slice %0 {offsets = [7, 0], sizes = [1, 128], strides = [1, 1]} : vector<16x128xf32> to vector<1x128xf32>
    %9 = vector.extract_strided_slice %0 {offsets = [8, 0], sizes = [1, 128], strides = [1, 1]} : vector<16x128xf32> to vector<1x128xf32>
    %10 = vector.extract_strided_slice %0 {offsets = [9, 0], sizes = [1, 128], strides = [1, 1]} : vector<16x128xf32> to vector<1x128xf32>
    %c0_1 = arith.constant 0 : index
    %c0_2 = arith.constant 0 : index
    %11 = vector.load %arg2[%c0_1, %c0_2] : memref<8x784xf32, #tpu.memory_space<vmem>>, vector<8x784xf32>
    %12 = arith.truncf %11 : vector<8x784xf32> to vector<8x784xbf16>
    %c0_3 = arith.constant 0 : index
    %c0_4 = arith.constant 0 : index
    %13 = vector.load %arg3[%c0_3, %c0_4] : memref<784x128xbf16, #tpu.memory_space<vmem>>, vector<784x128xbf16>
    %cst = arith.constant dense<0.000000e+00> : vector<8x128xf32>
    %14 = tpu.matmul %12, %13, %cst {dimension_numbers = #tpu.dot_dimension_numbers<[1], [0], [0], [1], [0, 0, 1, 1], [], []>} : vector<8x784xbf16>, vector<784x128xbf16>, vector<8x128xf32> -> vector<8x128xf32>
    %15 = vector.broadcast %1 : vector<1x128xf32> to vector<8x128xf32>
    %16 = arith.addf %14, %15 : vector<8x128xf32>
    %cst_5 = arith.constant dense<0.000000e+00> : vector<8xf32>
    %17 = vector.multi_reduction <add>, %16, %cst_5 [1] : vector<8x128xf32> to vector<8xf32>
    %18 = vector.shape_cast %17 : vector<8xf32> to vector<8x1xf32>
    %19 = arith.mulf %16, %16 : vector<8x128xf32>
    %cst_6 = arith.constant dense<0.000000e+00> : vector<8xf32>
    %20 = vector.multi_reduction <add>, %19, %cst_6 [1] : vector<8x128xf32> to vector<8xf32>
    %21 = vector.shape_cast %20 : vector<8xf32> to vector<8x1xf32>
    %cst_7 = arith.constant 0.00999999977 : f32
    %22 = vector.broadcast %cst_7 : f32 to vector<8x1xf32>
    %23 = arith.mulf %18, %22 : vector<8x1xf32>
    %cst_8 = arith.constant 0.00999999977 : f32
    %24 = vector.broadcast %cst_8 : f32 to vector<8x1xf32>
    %25 = arith.mulf %21, %24 : vector<8x1xf32>
    %26 = arith.mulf %23, %23 : vector<8x1xf32>
    %27 = arith.subf %25, %26 : vector<8x1xf32>
    %cst_9 = arith.constant 0.000000e+00 : f32
    %28 = vector.broadcast %cst_9 : f32 to vector<8x1xf32>
    %29 = arith.maximumf %27, %28 : vector<8x1xf32>
    %30 = vector.broadcast %23 : vector<8x1xf32> to vector<8x128xf32>
    %31 = arith.subf %16, %30 : vector<8x128xf32>
    %cst_10 = arith.constant 9.99999974E-6 : f32
    %32 = vector.broadcast %cst_10 : f32 to vector<8x1xf32>
    %33 = arith.addf %29, %32 : vector<8x1xf32>
    %34 = math.rsqrt %33 : vector<8x1xf32>
    %35 = vector.broadcast %34 : vector<8x1xf32> to vector<8x128xf32>
    %36 = arith.mulf %31, %35 : vector<8x128xf32>
    %37 = vector.broadcast %2 : vector<1x128xf32> to vector<8x128xf32>
    %38 = arith.mulf %36, %37 : vector<8x128xf32>
    %39 = vector.broadcast %3 : vector<1x128xf32> to vector<8x128xf32>
    %40 = arith.addf %38, %39 : vector<8x128xf32>
    %cst_11 = arith.constant 0.000000e+00 : f32
    %41 = vector.broadcast %cst_11 : f32 to vector<8x128xf32>
    %42 = arith.maximumf %40, %41 : vector<8x128xf32>
    %43 = arith.truncf %42 : vector<8x128xf32> to vector<8x128xbf16>
    %c0_12 = arith.constant 0 : index
    %c0_13 = arith.constant 0 : index
    %44 = vector.load %arg4[%c0_12, %c0_13] : memref<128x128xbf16, #tpu.memory_space<vmem>>, vector<128x128xbf16>
    %cst_14 = arith.constant dense<0.000000e+00> : vector<8x128xf32>
    %45 = tpu.matmul %43, %44, %cst_14 {dimension_numbers = #tpu.dot_dimension_numbers<[1], [0], [0], [1], [0, 0, 1, 1], [], []>} : vector<8x128xbf16>, vector<128x128xbf16>, vector<8x128xf32> -> vector<8x128xf32>
    %46 = vector.broadcast %4 : vector<1x128xf32> to vector<8x128xf32>
    %47 = arith.addf %45, %46 : vector<8x128xf32>
    %cst_15 = arith.constant dense<0.000000e+00> : vector<8xf32>
    %48 = vector.multi_reduction <add>, %47, %cst_15 [1] : vector<8x128xf32> to vector<8xf32>
    %49 = vector.shape_cast %48 : vector<8xf32> to vector<8x1xf32>
    %50 = arith.mulf %47, %47 : vector<8x128xf32>
    %cst_16 = arith.constant dense<0.000000e+00> : vector<8xf32>
    %51 = vector.multi_reduction <add>, %50, %cst_16 [1] : vector<8x128xf32> to vector<8xf32>
    %52 = vector.shape_cast %51 : vector<8xf32> to vector<8x1xf32>
    %cst_17 = arith.constant 0.00999999977 : f32
    %53 = vector.broadcast %cst_17 : f32 to vector<8x1xf32>
    %54 = arith.mulf %49, %53 : vector<8x1xf32>
    %cst_18 = arith.constant 0.00999999977 : f32
    %55 = vector.broadcast %cst_18 : f32 to vector<8x1xf32>
    %56 = arith.mulf %52, %55 : vector<8x1xf32>
    %57 = arith.mulf %54, %54 : vector<8x1xf32>
    %58 = arith.subf %56, %57 : vector<8x1xf32>
    %cst_19 = arith.constant 0.000000e+00 : f32
    %59 = vector.broadcast %cst_19 : f32 to vector<8x1xf32>
    %60 = arith.maximumf %58, %59 : vector<8x1xf32>
    %61 = vector.broadcast %54 : vector<8x1xf32> to vector<8x128xf32>
    %62 = arith.subf %47, %61 : vector<8x128xf32>
    %cst_20 = arith.constant 9.99999974E-6 : f32
    %63 = vector.broadcast %cst_20 : f32 to vector<8x1xf32>
    %64 = arith.addf %60, %63 : vector<8x1xf32>
    %65 = math.rsqrt %64 : vector<8x1xf32>
    %66 = vector.broadcast %65 : vector<8x1xf32> to vector<8x128xf32>
    %67 = arith.mulf %62, %66 : vector<8x128xf32>
    %68 = vector.broadcast %5 : vector<1x128xf32> to vector<8x128xf32>
    %69 = arith.mulf %67, %68 : vector<8x128xf32>
    %70 = vector.broadcast %6 : vector<1x128xf32> to vector<8x128xf32>
    %71 = arith.addf %69, %70 : vector<8x128xf32>
    %cst_21 = arith.constant 0.000000e+00 : f32
    %72 = vector.broadcast %cst_21 : f32 to vector<8x128xf32>
    %73 = arith.maximumf %71, %72 : vector<8x128xf32>
    %74 = arith.truncf %73 : vector<8x128xf32> to vector<8x128xbf16>
    %c0_22 = arith.constant 0 : index
    %c0_23 = arith.constant 0 : index
    %75 = vector.load %arg5[%c0_22, %c0_23] : memref<128x128xbf16, #tpu.memory_space<vmem>>, vector<128x128xbf16>
    %cst_24 = arith.constant dense<0.000000e+00> : vector<8x128xf32>
    %76 = tpu.matmul %74, %75, %cst_24 {dimension_numbers = #tpu.dot_dimension_numbers<[1], [0], [0], [1], [0, 0, 1, 1], [], []>} : vector<8x128xbf16>, vector<128x128xbf16>, vector<8x128xf32> -> vector<8x128xf32>
    %77 = vector.broadcast %7 : vector<1x128xf32> to vector<8x128xf32>
    %78 = arith.addf %76, %77 : vector<8x128xf32>
    %cst_25 = arith.constant dense<0.000000e+00> : vector<8xf32>
    %79 = vector.multi_reduction <add>, %78, %cst_25 [1] : vector<8x128xf32> to vector<8xf32>
    %80 = vector.shape_cast %79 : vector<8xf32> to vector<8x1xf32>
    %81 = arith.mulf %78, %78 : vector<8x128xf32>
    %cst_26 = arith.constant dense<0.000000e+00> : vector<8xf32>
    %82 = vector.multi_reduction <add>, %81, %cst_26 [1] : vector<8x128xf32> to vector<8xf32>
    %83 = vector.shape_cast %82 : vector<8xf32> to vector<8x1xf32>
    %cst_27 = arith.constant 0.00999999977 : f32
    %84 = vector.broadcast %cst_27 : f32 to vector<8x1xf32>
    %85 = arith.mulf %80, %84 : vector<8x1xf32>
    %cst_28 = arith.constant 0.00999999977 : f32
    %86 = vector.broadcast %cst_28 : f32 to vector<8x1xf32>
    %87 = arith.mulf %83, %86 : vector<8x1xf32>
    %88 = arith.mulf %85, %85 : vector<8x1xf32>
    %89 = arith.subf %87, %88 : vector<8x1xf32>
    %cst_29 = arith.constant 0.000000e+00 : f32
    %90 = vector.broadcast %cst_29 : f32 to vector<8x1xf32>
    %91 = arith.maximumf %89, %90 : vector<8x1xf32>
    %92 = vector.broadcast %85 : vector<8x1xf32> to vector<8x128xf32>
    %93 = arith.subf %78, %92 : vector<8x128xf32>
    %cst_30 = arith.constant 9.99999974E-6 : f32
    %94 = vector.broadcast %cst_30 : f32 to vector<8x1xf32>
    %95 = arith.addf %91, %94 : vector<8x1xf32>
    %96 = math.rsqrt %95 : vector<8x1xf32>
    %97 = vector.broadcast %96 : vector<8x1xf32> to vector<8x128xf32>
    %98 = arith.mulf %93, %97 : vector<8x128xf32>
    %99 = vector.broadcast %8 : vector<1x128xf32> to vector<8x128xf32>
    %100 = arith.mulf %98, %99 : vector<8x128xf32>
    %101 = vector.broadcast %9 : vector<1x128xf32> to vector<8x128xf32>
    %102 = arith.addf %100, %101 : vector<8x128xf32>
    %cst_31 = arith.constant 0.000000e+00 : f32
    %103 = vector.broadcast %cst_31 : f32 to vector<8x128xf32>
    %104 = arith.maximumf %102, %103 : vector<8x128xf32>
    %105 = arith.truncf %104 : vector<8x128xf32> to vector<8x128xbf16>
    %c0_32 = arith.constant 0 : index
    %c0_33 = arith.constant 0 : index
    %106 = vector.load %arg6[%c0_32, %c0_33] : memref<128x128xbf16, #tpu.memory_space<vmem>>, vector<128x128xbf16>
    %cst_34 = arith.constant dense<0.000000e+00> : vector<8x128xf32>
    %107 = tpu.matmul %105, %106, %cst_34 {dimension_numbers = #tpu.dot_dimension_numbers<[1], [0], [0], [1], [0, 0, 1, 1], [], []>} : vector<8x128xbf16>, vector<128x128xbf16>, vector<8x128xf32> -> vector<8x128xf32>
    %108 = vector.broadcast %10 : vector<1x128xf32> to vector<8x128xf32>
    %109 = arith.addf %107, %108 : vector<8x128xf32>
    %c0_35 = arith.constant 0 : index
    %c0_36 = arith.constant 0 : index
    %110 = vector.load %arg8[%c0_35, %c0_36] : memref<8x128xf32, #tpu.memory_space<vmem>>, vector<8x128xf32>
    tpu.vector_store %arg8[%c0_35, %c0_36], %109 {strides = array<i32>} : memref<8x128xf32, #tpu.memory_space<vmem>>, vector<8x128xf32>,
    return
  }
  func.func @transform_0(%arg0: i32) -> i32 {
    %c0_i32 = arith.constant 0 : i32
    %c0_i32_0 = arith.constant 0 : i32
    return %c0_i32 : i32
  }
  func.func @transform_1(%arg0: i32) -> (i32, i32) {
    %c0_i32 = arith.constant 0 : i32
    %c0_i32_0 = arith.constant 0 : i32
    return %arg0, %c0_i32 : i32, i32
  }
  func.func @transform_2(%arg0: i32) -> (i32, i32) {
    %c0_i32 = arith.constant 0 : i32
    %c0_i32_0 = arith.constant 0 : i32
    %c0_i32_1 = arith.constant 0 : i32
    return %c0_i32, %c0_i32_0 : i32, i32
  }
  func.func @transform_3(%arg0: i32) -> (i32, i32) {
    %c0_i32 = arith.constant 0 : i32
    %c0_i32_0 = arith.constant 0 : i32
    %c0_i32_1 = arith.constant 0 : i32
    return %c0_i32, %c0_i32_0 : i32, i32
  }
  func.func @transform_4(%arg0: i32) -> (i32, i32) {
    %c0_i32 = arith.constant 0 : i32
    %c0_i32_0 = arith.constant 0 : i32
    %c0_i32_1 = arith.constant 0 : i32
    return %c0_i32, %c0_i32_0 : i32, i32
  }
  func.func @transform_5(%arg0: i32) -> (i32, i32) {
    %c0_i32 = arith.constant 0 : i32
    %c0_i32_0 = arith.constant 0 : i32
    %c0_i32_1 = arith.constant 0 : i32
    return %c0_i32, %c0_i32_0 : i32, i32
  }
  func.func @transform_6(%arg0: i32) -> (i32, i32) {
    %c0_i32 = arith.constant 0 : i32
    %c0_i32_0 = arith.constant 0 : i32
    %c0_i32_1 = arith.constant 0 : i32
    return %c0_i32, %c0_i32_0 : i32, i32
  }
  func.func @transform_7(%arg0: i32) -> (i32, i32) {
    %c0_i32 = arith.constant 0 : i32
    %c0_i32_0 = arith.constant 0 : i32
    return %arg0, %c0_i32 : i32, i32
  }
}

</mosaic_0001>

<llo_original>
// kernel: _forward.1
$region0: #{_forward.1}
  #allocation0 [shape = 'u32[]', space=smem, size = 0x4, offset = 0x4, fixed_abs, tag = 'smem constant byte address 0x4 - core index']
  #allocation1 [shape = 'u32[144,128]{1,0:T(1,128)}', space=vmem, size = 0x12000, scoped, tag = 'internal scratch']
  #allocation2 [shape = 'u32[1]{0:T(128)S(6)}', space=smem, size = 0x200, scoped, tag = 'scoped memory for _forward.1']
  %s0 = inlined_call_operand.<no memory space> [shape: u32[1], index: 0, kind: input, shape index: {}]
  %s1 = inlined_call_operand.vmem [shape: f32[8,784], index: 1, kind: input, shape index: {}]
  %s2 = inlined_call_operand.hbm [shape: bf16[784,128], index: 2, kind: input, shape index: {}]
  %s3 = inlined_call_operand.vmem [shape: bf16[128,128], index: 3, kind: input, shape index: {}]
  %s4 = inlined_call_operand.vmem [shape: bf16[128,128], index: 4, kind: input, shape index: {}]
  %s5 = inlined_call_operand.vmem [shape: bf16[128,128], index: 5, kind: input, shape index: {}]
  %s6 = inlined_call_operand.vmem [shape: f32[16,128], index: 6, kind: input, shape index: {}]
  %s7 = inlined_call_operand.vmem [shape: f32[8,128], index: 7, kind: output, shape index: {}]
  %s8 = sld [smem:[#allocation0]]
  $region42: #{_forward.1} parent=0
    _
  %s10 = ssub.s32 1, %s8
  %s11 = scalar_select 0, %s10, %s8
  %12 = sst [smem:[#allocation2]] %s0
  $region1: #{_forward.1} parent=0
    #allocation3 [shape = 'u8[200704]{0}', space=vmem, size = 0x31000, scoped, tag = 'input window, operand 2, single buffered']
    #allocation4 [shape = 's32[1]{0}', space=sflag, size = 0x4, scoped, tag = 'scoped memory for _forward.1']
    %13 = vsyncpa [#allocation4], 0
    // Predicated region
    $region2: #{_forward.1} parent=1 // pred_check
      _
    $region3: #{_forward.1} parent=1 // pred_check_branch
      %15 = sbr.rel (0) target = $region5
    $region4: #{_forward.1} parent=1 // pred_region
      _
    $region5: #{_forward.1} parent=1 // pred_fallthru
      _
    // Predicated region
    $region6: #{_forward.1} parent=1 // pred_check
      _
    $region7: #{_forward.1} parent=1 // pred_check_branch
      %17 = sbr.rel (0) target = $region9
    $region8: #{_forward.1} parent=1 // pred_region
      _
    $region9: #{_forward.1} parent=1 // pred_fallthru
      _
    // Predicated region
    $region10: #{_forward.1} parent=1 // pred_check
      _
    $region11: #{_forward.1} parent=1 // pred_check_branch
      %19 = sbr.rel (0) target = $region13
    $region12: #{_forward.1} parent=1 // pred_region
      %s21 = ssub.s32 6272, 6272
      %22 = vsyncadd [#allocation4], %s21
      %s23 = sshll.u32 [#allocation3], 4
      %s24 = int_to_ptr.vmem [resolvable:$true] %s23
      %29 = dma.hbm_to_vmem [thread:$0]  %s2, 6272, %s24, [#allocation4], 64, 64, 4
    $region13: #{_forward.1} parent=1 // pred_fallthru
      _
    // Predicated region
    $region14: #{_forward.1} parent=1 // pred_check
      _
    $region15: #{_forward.1} parent=1 // pred_check_branch
      %31 = sbr.rel (0) target = $region17
    $region16: #{_forward.1} parent=1 // pred_region
      _
    $region17: #{_forward.1} parent=1 // pred_fallthru
      _
    // Predicated region
    $region18: #{_forward.1} parent=1 // pred_check
      _
    $region19: #{_forward.1} parent=1 // pred_check_branch
      %33 = sbr.rel (0) target = $region21
    $region20: #{_forward.1} parent=1 // pred_region
      _
    $region21: #{_forward.1} parent=1 // pred_fallthru
      _
    // Predicated region
    $region22: #{_forward.1} parent=1 // pred_check
      _
    $region23: #{_forward.1} parent=1 // pred_check_branch
      %35 = sbr.rel (0) target = $region25
    $region24: #{_forward.1} parent=1 // pred_region
      _
    $region25: #{_forward.1} parent=1 // pred_fallthru
      _
    // Predicated region
    $region26: #{_forward.1} parent=1 // pred_check
      _
    $region27: #{_forward.1} parent=1 // pred_check_branch
      %37 = sbr.rel (0) target = $region29
    $region28: #{_forward.1} parent=1 // pred_region
      _
    $region29: #{_forward.1} parent=1 // pred_fallthru
      _
    // Predicated region
    $region30: #{_forward.1} parent=1 // pred_check
      _
    $region31: #{_forward.1} parent=1 // pred_check_branch
      %39 = sbr.rel (0) target = $region33
    $region32: #{_forward.1} parent=1 // pred_region
      %40 = dma.done [#allocation4], 6272
    $region33: #{_forward.1} parent=1 // pred_fallthru
      _
    %v42 = vld [vmem:[%s6] sm:$0xff]
    %v43 = vld [vmem:[%s6 + $0x8] sm:$0xff]
    %v44 = vld [vmem:[%s1] sm:$0xff]
    %v45 = vld [vmem:[%s1 + $0x8] sm:$0xff]
    %v46 = vld [vmem:[%s1 + $0x10] sm:$0xff]
    %v47 = vld [vmem:[%s1 + $0x18] sm:$0xff]
    %v48 = vld [vmem:[%s1 + $0x20] sm:$0xff]
    %v49 = vld [vmem:[%s1 + $0x28] sm:$0xff]
    %v50 = vld [vmem:[%s1 + $0x30] sm:$0xff]
    %v51 = vpack.c.bf16 %v44, %v44
    %v52 = vpack.c.bf16 %v45, %v45
    %v53 = vpack.c.bf16 %v46, %v46
    %v54 = vpack.c.bf16 %v47, %v47
    %v55 = vpack.c.bf16 %v48, %v48
    %v56 = vpack.c.bf16 %v49, %v49
    %v57 = vpack.c.bf16 %v50, %v50
    %v58 = vld [vmem:[#allocation3] sm:$0xf]
    %v59 = vld [vmem:[#allocation3 + $0x4] sm:$0xf]
    %v60 = vld [vmem:[#allocation3 + $0x8] sm:$0xf]
    %v61 = vld [vmem:[#allocation3 + $0xc] sm:$0xf]
    %v62 = vld [vmem:[#allocation3 + $0x10] sm:$0xf]
    %v63 = vld [vmem:[#allocation3 + $0x14] sm:$0xf]
    %v64 = vld [vmem:[#allocation3 + $0x18] sm:$0xf]
    %v65 = vld [vmem:[#allocation3 + $0x1c] sm:$0xf]
    %v66 = vld [vmem:[#allocation3 + $0x20] sm:$0xf]
    %v67 = vld [vmem:[#allocation3 + $0x24] sm:$0xf]
    %v68 = vld [vmem:[#allocation3 + $0x28] sm:$0xf]
    %v69 = vld [vmem:[#allocation3 + $0x2c] sm:$0xf]
    %v70 = vld [vmem:[#allocation3 + $0x30] sm:$0xf]
    %v71 = vld [vmem:[#allocation3 + $0x34] sm:$0xf]
    %v72 = vld [vmem:[#allocation3 + $0x38] sm:$0xf]
    %v73 = vld [vmem:[#allocation3 + $0x3c] sm:$0xf]
    %v74 = vld [vmem:[#allocation3 + $0x40] sm:$0xf]
    %v75 = vld [vmem:[#allocation3 + $0x44] sm:$0xf]
    %v76 = vld [vmem:[#allocation3 + $0x48] sm:$0xf]
    %v77 = vld [vmem:[#allocation3 + $0x4c] sm:$0xf]
    %v78 = vld [vmem:[#allocation3 + $0x50] sm:$0xf]
    %v79 = vld [vmem:[#allocation3 + $0x54] sm:$0xf]
    %v80 = vld [vmem:[#allocation3 + $0x58] sm:$0xf]
    %v81 = vld [vmem:[#allocation3 + $0x5c] sm:$0xf]
    %v82 = vld [vmem:[#allocation3 + $0x60] sm:$0xf]
    %v83 = vld [vmem:[#allocation3 + $0x64] sm:$0xf]
    %v84 = vld [vmem:[#allocation3 + $0x68] sm:$0xf]
    %v85 = vld [vmem:[#allocation3 + $0x6c] sm:$0xf]
    %v86 = vld [vmem:[#allocation3 + $0x70] sm:$0xf]
    %v87 = vld [vmem:[#allocation3 + $0x74] sm:$0xf]
    %v88 = vld [vmem:[#allocation3 + $0x78] sm:$0xf]
    %v89 = vld [vmem:[#allocation3 + $0x7c] sm:$0xf]
    %v90 = vld [vmem:[#allocation3 + $0x80] sm:$0xf]
    %v91 = vld [vmem:[#allocation3 + $0x84] sm:$0xf]
    %v92 = vld [vmem:[#allocation3 + $0x88] sm:$0xf]
    %v93 = vld [vmem:[#allocation3 + $0x8c] sm:$0xf]
    %v94 = vld [vmem:[#allocation3 + $0x90] sm:$0xf]
    %v95 = vld [vmem:[#allocation3 + $0x94] sm:$0xf]
    %v96 = vld [vmem:[#allocation3 + $0x98] sm:$0xf]
    %v97 = vld [vmem:[#allocation3 + $0x9c] sm:$0xf]
    %v98 = vld [vmem:[#allocation3 + $0xa0] sm:$0xf]
    %v99 = vld [vmem:[#allocation3 + $0xa4] sm:$0xf]
    %v100 = vld [vmem:[#allocation3 + $0xa8] sm:$0xf]
    %v101 = vld [vmem:[#allocation3 + $0xac] sm:$0xf]
    %v102 = vld [vmem:[#allocation3 + $0xb0] sm:$0xf]
    %v103 = vld [vmem:[#allocation3 + $0xb4] sm:$0xf]
    %v104 = vld [vmem:[#allocation3 + $0xb8] sm:$0xf]
    %v105 = vld [vmem:[#allocation3 + $0xbc] sm:$0xf]
    %v106 = vld [vmem:[#allocation3 + $0xc0] sm:$0xf]
    %v107 = vld [vmem:[#allocation3 + $0xc4] sm:$0xf]
    %v108 = vld [vmem:[#allocation3 + $0xc8] sm:$0xf]
    %v109 = vld [vmem:[#allocation3 + $0xcc] sm:$0xf]
    %v110 = vld [vmem:[#allocation3 + $0xd0] sm:$0xf]
    %v111 = vld [vmem:[#allocation3 + $0xd4] sm:$0xf]
    %v112 = vld [vmem:[#allocation3 + $0xd8] sm:$0xf]
    %v113 = vld [vmem:[#allocation3 + $0xdc] sm:$0xf]
    %v114 = vld [vmem:[#allocation3 + $0xe0] sm:$0xf]
    %v115 = vld [vmem:[#allocation3 + $0xe4] sm:$0xf]
    %v116 = vld [vmem:[#allocation3 + $0xe8] sm:$0xf]
    %v117 = vld [vmem:[#allocation3 + $0xec] sm:$0xf]
    %v118 = vld [vmem:[#allocation3 + $0xf0] sm:$0xf]
    %v119 = vld [vmem:[#allocation3 + $0xf4] sm:$0xf]
    %v120 = vld [vmem:[#allocation3 + $0xf8] sm:$0xf]
    %v121 = vld [vmem:[#allocation3 + $0xfc] sm:$0xf]
    %v122 = vld [vmem:[#allocation3 + $0x100] sm:$0xf]
    %v123 = vld [vmem:[#allocation3 + $0x104] sm:$0xf]
    %v124 = vld [vmem:[#allocation3 + $0x108] sm:$0xf]
    %v125 = vld [vmem:[#allocation3 + $0x10c] sm:$0xf]
    %v126 = vld [vmem:[#allocation3 + $0x110] sm:$0xf]
    %v127 = vld [vmem:[#allocation3 + $0x114] sm:$0xf]
    %v128 = vld [vmem:[#allocation3 + $0x118] sm:$0xf]
    %v129 = vld [vmem:[#allocation3 + $0x11c] sm:$0xf]
    %v130 = vld [vmem:[#allocation3 + $0x120] sm:$0xf]
    %v131 = vld [vmem:[#allocation3 + $0x124] sm:$0xf]
    %v132 = vld [vmem:[#allocation3 + $0x128] sm:$0xf]
    %v133 = vld [vmem:[#allocation3 + $0x12c] sm:$0xf]
    %v134 = vld [vmem:[#allocation3 + $0x130] sm:$0xf]
    %v135 = vld [vmem:[#allocation3 + $0x134] sm:$0xf]
    %v136 = vld [vmem:[#allocation3 + $0x138] sm:$0xf]
    %v137 = vld [vmem:[#allocation3 + $0x13c] sm:$0xf]
    %v138 = vld [vmem:[#allocation3 + $0x140] sm:$0xf]
    %v139 = vld [vmem:[#allocation3 + $0x144] sm:$0xf]
    %v140 = vld [vmem:[#allocation3 + $0x148] sm:$0xf]
    %v141 = vld [vmem:[#allocation3 + $0x14c] sm:$0xf]
    %v142 = vld [vmem:[#allocation3 + $0x150] sm:$0xf]
    %v143 = vld [vmem:[#allocation3 + $0x154] sm:$0xf]
    %v144 = vld [vmem:[#allocation3 + $0x158] sm:$0xf]
    %v145 = vld [vmem:[#allocation3 + $0x15c] sm:$0xf]
    %v146 = vld [vmem:[#allocation3 + $0x160] sm:$0xf]
    %v147 = vld [vmem:[#allocation3 + $0x164] sm:$0xf]
    %v148 = vld [vmem:[#allocation3 + $0x168] sm:$0xf]
    %v149 = vld [vmem:[#allocation3 + $0x16c] sm:$0xf]
    %v150 = vld [vmem:[#allocation3 + $0x170] sm:$0xf]
    %v151 = vld [vmem:[#allocation3 + $0x174] sm:$0xf]
    %v152 = vld [vmem:[#allocation3 + $0x178] sm:$0xf]
    %v153 = vld [vmem:[#allocation3 + $0x17c] sm:$0xf]
    %v154 = vld [vmem:[#allocation3 + $0x180] sm:$0xf]
    %v155 = vld [vmem:[#allocation3 + $0x184] sm:$0xf]
    %v156 = vlaneseq
    %v157 = vshrl.u32 %v156, 7
    %v158 = vsub.s32 0, %v157
    %v159 = vrot.slane %v42, %v158
    %v258 = vunpack.c.l.b16 %v58
    %v259 = vunpack.c.l.b16 %v59
    %v260 = vunpack.c.l.b16 %v60
    %v261 = vunpack.c.l.b16 %v61
    %v262 = vunpack.c.l.b16 %v62
    %v263 = vunpack.c.l.b16 %v63
    %v264 = vunpack.c.l.b16 %v64
    %v265 = vunpack.c.l.b16 %v65
    %v266 = vunpack.c.l.b16 %v66
    %v267 = vunpack.c.l.b16 %v67
    %v268 = vunpack.c.l.b16 %v68
    %v269 = vunpack.c.l.b16 %v69
    %v270 = vunpack.c.l.b16 %v70
    %v271 = vunpack.c.l.b16 %v71
    %v272 = vunpack.c.l.b16 %v72
    %v273 = vunpack.c.l.b16 %v73
    %v274 = vunpack.c.l.b16 %v74
    %v275 = vunpack.c.l.b16 %v75
    %v276 = vunpack.c.l.b16 %v76
    %v277 = vunpack.c.l.b16 %v77
    %v278 = vunpack.c.l.b16 %v78
    %v279 = vunpack.c.l.b16 %v79
    %v280 = vunpack.c.l.b16 %v80
    %v281 = vunpack.c.l.b16 %v81
    %v282 = vunpack.c.l.b16 %v82
    %v283 = vunpack.c.l.b16 %v83
    %v284 = vunpack.c.l.b16 %v84
    %v285 = vunpack.c.l.b16 %v85
    %v286 = vunpack.c.l.b16 %v86
    %v287 = vunpack.c.l.b16 %v87
    %v288 = vunpack.c.l.b16 %v88
    %v289 = vunpack.c.l.b16 %v89
    %v290 = vunpack.c.l.b16 %v90
    %v291 = vunpack.c.l.b16 %v91
    %v292 = vunpack.c.l.b16 %v92
    %v293 = vunpack.c.l.b16 %v93
    %v294 = vunpack.c.l.b16 %v94
    %v295 = vunpack.c.l.b16 %v95
    %v296 = vunpack.c.l.b16 %v96
    %v297 = vunpack.c.l.b16 %v97
    %v298 = vunpack.c.l.b16 %v98
    %v299 = vunpack.c.l.b16 %v99
    %v300 = vunpack.c.l.b16 %v100
    %v301 = vunpack.c.l.b16 %v101
    %v302 = vunpack.c.l.b16 %v102
    %v303 = vunpack.c.l.b16 %v103
    %v304 = vunpack.c.l.b16 %v104
    %v305 = vunpack.c.l.b16 %v105
    %v306 = vunpack.c.l.b16 %v106
    %v307 = vunpack.c.l.b16 %v107
    %v308 = vunpack.c.l.b16 %v108
    %v309 = vunpack.c.l.b16 %v109
    %v310 = vunpack.c.l.b16 %v110
    %v311 = vunpack.c.l.b16 %v111
    %v312 = vunpack.c.l.b16 %v112
    %v313 = vunpack.c.l.b16 %v113
    %v314 = vunpack.c.l.b16 %v114
    %v315 = vunpack.c.l.b16 %v115
    %v316 = vunpack.c.l.b16 %v116
    %v317 = vunpack.c.l.b16 %v117
    %v318 = vunpack.c.l.b16 %v118
    %v319 = vunpack.c.l.b16 %v119
    %v320 = vunpack.c.l.b16 %v120
    %v321 = vunpack.c.l.b16 %v121
    %v322 = vunpack.c.l.b16 %v122
    %v323 = vunpack.c.l.b16 %v123
    %v324 = vunpack.c.l.b16 %v124
    %v325 = vunpack.c.l.b16 %v125
    %v326 = vunpack.c.l.b16 %v126
    %v327 = vunpack.c.l.b16 %v127
    %v328 = vunpack.c.l.b16 %v128
    %v329 = vunpack.c.l.b16 %v129
    %v330 = vunpack.c.l.b16 %v130
    %v331 = vunpack.c.l.b16 %v131
    %v332 = vunpack.c.l.b16 %v132
    %v333 = vunpack.c.l.b16 %v133
    %v334 = vunpack.c.l.b16 %v134
    %v335 = vunpack.c.l.b16 %v135
    %v336 = vunpack.c.l.b16 %v136
    %v337 = vunpack.c.l.b16 %v137
    %v338 = vunpack.c.l.b16 %v138
    %v339 = vunpack.c.l.b16 %v139
    %v340 = vunpack.c.l.b16 %v140
    %v341 = vunpack.c.l.b16 %v141
    %v342 = vunpack.c.l.b16 %v142
    %v343 = vunpack.c.l.b16 %v143
    %v344 = vunpack.c.l.b16 %v144
    %v345 = vunpack.c.l.b16 %v145
    %v346 = vunpack.c.l.b16 %v146
    %v347 = vunpack.c.l.b16 %v147
    %v348 = vunpack.c.l.b16 %v148
    %v349 = vunpack.c.l.b16 %v149
    %v350 = vunpack.c.l.b16 %v150
    %v351 = vunpack.c.l.b16 %v151
    %v352 = vunpack.c.l.b16 %v152
    %v353 = vunpack.c.l.b16 %v153
    %v354 = vunpack.c.l.b16 %v154
    %v355 = vunpack.c.l.b16 %v155
    %v356 = vpack.c.b16 %v259, %v258
    %v357 = vpack.c.b16 %v261, %v260
    %v358 = vpack.c.b16 %v263, %v262
    %v359 = vpack.c.b16 %v265, %v264
    %v360 = vpack.c.b16 %v267, %v266
    %v361 = vpack.c.b16 %v269, %v268
    %v362 = vpack.c.b16 %v271, %v270
    %v363 = vpack.c.b16 %v273, %v272
    %v364 = vpack.c.b16 %v275, %v274
    %v365 = vpack.c.b16 %v277, %v276
    %v366 = vpack.c.b16 %v279, %v278
    %v367 = vpack.c.b16 %v281, %v280
    %v368 = vpack.c.b16 %v283, %v282
    %v369 = vpack.c.b16 %v285, %v284
    %v370 = vpack.c.b16 %v287, %v286
    %v371 = vpack.c.b16 %v289, %v288
    %v372 = vpack.c.b16 %v291, %v290
    %v373 = vpack.c.b16 %v293, %v292
    %v374 = vpack.c.b16 %v295, %v294
    %v375 = vpack.c.b16 %v297, %v296
    %v376 = vpack.c.b16 %v299, %v298
    %v377 = vpack.c.b16 %v301, %v300
    %v378 = vpack.c.b16 %v303, %v302
    %v379 = vpack.c.b16 %v305, %v304
    %v380 = vpack.c.b16 %v307, %v306
    %v381 = vpack.c.b16 %v309, %v308
    %v382 = vpack.c.b16 %v311, %v310
    %v383 = vpack.c.b16 %v313, %v312
    %v384 = vpack.c.b16 %v315, %v314
    %v385 = vpack.c.b16 %v317, %v316
    %v386 = vpack.c.b16 %v319, %v318
    %v387 = vpack.c.b16 %v321, %v320
    %v388 = vpack.c.b16 %v323, %v322
    %v389 = vpack.c.b16 %v325, %v324
    %v390 = vpack.c.b16 %v327, %v326
    %v391 = vpack.c.b16 %v329, %v328
    %v392 = vpack.c.b16 %v331, %v330
    %v393 = vpack.c.b16 %v333, %v332
    %v394 = vpack.c.b16 %v335, %v334
    %v395 = vpack.c.b16 %v337, %v336
    %v396 = vpack.c.b16 %v339, %v338
    %v397 = vpack.c.b16 %v341, %v340
    %v398 = vpack.c.b16 %v343, %v342
    %v399 = vpack.c.b16 %v345, %v344
    %v400 = vpack.c.b16 %v347, %v346
    %v401 = vpack.c.b16 %v349, %v348
    %v402 = vpack.c.b16 %v351, %v350
    %v403 = vpack.c.b16 %v353, %v352
    %v404 = vpack.c.b16 %v355, %v354
    %vm454 = vcmask 130048
    %v456 = vsel %vm454, %v57, 0
    %458 = vmatprep.subr.bf16.mxu0 0
    %459 = vmatpush1.bf16.msra.mxu0 %v356
    %460 = vmatprep.subr.bf16.mxu0 0
    %461 = vmatpush1.bf16.msra.mxu0 %v357
    %462 = vmatprep.subr.bf16.mxu0 0
    %463 = vmatpush1.bf16.msra.mxu0 %v358
    %464 = vmatprep.subr.bf16.mxu0 0
    %465 = vmatpush1.bf16.msra.mxu0 %v359
    %466 = vmatprep.subr.bf16.mxu0 0
    %467 = vmatpush1.bf16.msra.mxu0 %v360
    %468 = vmatprep.subr.bf16.mxu0 0
    %469 = vmatpush1.bf16.msra.mxu0 %v361
    %470 = vmatprep.subr.bf16.mxu0 0
    %471 = vmatpush1.bf16.msra.mxu0 %v362
    %472 = vmatprep.subr.bf16.mxu0 0
    %473 = vmatpush1.bf16.msra.mxu0 %v363
    %474 = vmatprep.subr.bf16.mxu0 0
    %475 = vmatpush1.bf16.msra.mxu0 %v364
    %476 = vmatprep.subr.bf16.mxu0 0
    %477 = vmatpush1.bf16.msra.mxu0 %v365
    %478 = vmatprep.subr.bf16.mxu0 0
    %479 = vmatpush1.bf16.msra.mxu0 %v366
    %480 = vmatprep.subr.bf16.mxu0 0
    %481 = vmatpush1.bf16.msra.mxu0 %v367
    %482 = vmatprep.subr.bf16.mxu0 0
    %483 = vmatpush1.bf16.msra.mxu0 %v368
    %484 = vmatprep.subr.bf16.mxu0 0
    %485 = vmatpush1.bf16.msra.mxu0 %v369
    %486 = vmatprep.subr.bf16.mxu0 0
    %487 = vmatpush1.bf16.msra.mxu0 %v370
    %488 = vmatprep.subr.bf16.mxu0 0
    %489 = vmatpush1.bf16.msra.mxu0 %v371
    %490 = vmatprep.mubr.bf16.mxu0 %v52
    %491 = vmatmul.mubr.bf16.gmra.mrb[0].mxu0 %v51
    %v492 = vpop.f32.mrb[0].mxu0
    %v493 = vadd.f32 %v159, %v492
    %v494 = vpop.f32.mrb[0].mxu0
    %v495 = vpop.f32.mrb[0].mxu0
    %v496 = vpop.f32.mrb[0].mxu0
    %497 = vdwg.mxu0
    %498 = vmatprep.subr.bf16.mxu0 0
    %499 = vmatpush1.bf16.msra.mxu0 %v372
    %500 = vmatprep.subr.bf16.mxu0 0
    %501 = vmatpush1.bf16.msra.mxu0 %v373
    %502 = vmatprep.subr.bf16.mxu0 0
    %503 = vmatpush1.bf16.msra.mxu0 %v374
    %504 = vmatprep.subr.bf16.mxu0 0
    %505 = vmatpush1.bf16.msra.mxu0 %v375
    %506 = vmatprep.subr.bf16.mxu0 0
    %507 = vmatpush1.bf16.msra.mxu0 %v376
    %508 = vmatprep.subr.bf16.mxu0 0
    %509 = vmatpush1.bf16.msra.mxu0 %v377
    %510 = vmatprep.subr.bf16.mxu0 0
    %511 = vmatpush1.bf16.msra.mxu0 %v378
    %512 = vmatprep.subr.bf16.mxu0 0
    %513 = vmatpush1.bf16.msra.mxu0 %v379
    %514 = vmatprep.subr.bf16.mxu0 0
    %515 = vmatpush1.bf16.msra.mxu0 %v380
    %516 = vmatprep.subr.bf16.mxu0 0
    %517 = vmatpush1.bf16.msra.mxu0 %v381
    %518 = vmatprep.subr.bf16.mxu0 0
    %519 = vmatpush1.bf16.msra.mxu0 %v382
    %520 = vmatprep.subr.bf16.mxu0 0
    %521 = vmatpush1.bf16.msra.mxu0 %v383
    %522 = vmatprep.subr.bf16.mxu0 0
    %523 = vmatpush1.bf16.msra.mxu0 %v384
    %524 = vmatprep.subr.bf16.mxu0 0
    %525 = vmatpush1.bf16.msra.mxu0 %v385
    %526 = vmatprep.subr.bf16.mxu0 0
    %527 = vmatpush1.bf16.msra.mxu0 %v386
    %528 = vmatprep.subr.bf16.mxu0 0
    %529 = vmatpush1.bf16.msra.mxu0 %v387
    %530 = vmatprep.mubr.bf16.mxu0 %v54
    %531 = vmatmul.mubr.bf16.gmra.mrb[0].mxu0 %v53
    %v532 = vpop.f32.mrb[0].mxu0
    %v533 = vadd.f32 %v493, %v532
    %v534 = vpop.f32.mrb[0].mxu0
    %v535 = vpop.f32.mrb[0].mxu0
    %v536 = vpop.f32.mrb[0].mxu0
    %537 = vdwg.mxu0
    %538 = vmatprep.subr.bf16.mxu0 0
    %539 = vmatpush1.bf16.msra.mxu0 %v388
    %540 = vmatprep.subr.bf16.mxu0 0
    %541 = vmatpush1.bf16.msra.mxu0 %v389
    %542 = vmatprep.subr.bf16.mxu0 0
    %543 = vmatpush1.bf16.msra.mxu0 %v390
    %544 = vmatprep.subr.bf16.mxu0 0
    %545 = vmatpush1.bf16.msra.mxu0 %v391
    %546 = vmatprep.subr.bf16.mxu0 0
    %547 = vmatpush1.bf16.msra.mxu0 %v392
    %548 = vmatprep.subr.bf16.mxu0 0
    %549 = vmatpush1.bf16.msra.mxu0 %v393
    %550 = vmatprep.subr.bf16.mxu0 0
    %551 = vmatpush1.bf16.msra.mxu0 %v394
    %552 = vmatprep.subr.bf16.mxu0 0
    %553 = vmatpush1.bf16.msra.mxu0 %v395
    %554 = vmatprep.subr.bf16.mxu0 0
    %555 = vmatpush1.bf16.msra.mxu0 %v396
    %556 = vmatprep.subr.bf16.mxu0 0
    %557 = vmatpush1.bf16.msra.mxu0 %v397
    %558 = vmatprep.subr.bf16.mxu0 0
    %559 = vmatpush1.bf16.msra.mxu0 %v398
    %560 = vmatprep.subr.bf16.mxu0 0
    %561 = vmatpush1.bf16.msra.mxu0 %v399
    %562 = vmatprep.subr.bf16.mxu0 0
    %563 = vmatpush1.bf16.msra.mxu0 %v400
    %564 = vmatprep.subr.bf16.mxu0 0
    %565 = vmatpush1.bf16.msra.mxu0 %v401
    %566 = vmatprep.subr.bf16.mxu0 0
    %567 = vmatpush1.bf16.msra.mxu0 %v402
    %568 = vmatprep.subr.bf16.mxu0 0
    %569 = vmatpush1.bf16.msra.mxu0 %v403
    %570 = vmatprep.mubr.bf16.mxu0 %v56
    %571 = vmatmul.mubr.bf16.gmra.mrb[0].mxu0 %v55
    %v572 = vpop.f32.mrb[0].mxu0
    %v573 = vadd.f32 %v533, %v572
    %v574 = vpop.f32.mrb[0].mxu0
    %v575 = vpop.f32.mrb[0].mxu0
    %v576 = vpop.f32.mrb[0].mxu0
    %577 = vdwg.mxu0
    %578 = vmatprep.subr.bf16.mxu0 0
    %579 = vmatpush1.bf16.msra.mxu0 %v404
    %580 = vmatprep.subr.bf16.mxu0 0
    %581 = vmatpush1.bf16.msra.mxu0 0
    %582 = vmatprep.subr.bf16.mxu0 0
    %583 = vmatpush1.bf16.msra.mxu0 0
    %584 = vmatprep.subr.bf16.mxu0 0
    %585 = vmatpush1.bf16.msra.mxu0 0
    %586 = vmatprep.subr.bf16.mxu0 0
    %587 = vmatpush1.bf16.msra.mxu0 0
    %588 = vmatprep.subr.bf16.mxu0 0
    %589 = vmatpush1.bf16.msra.mxu0 0
    %590 = vmatprep.subr.bf16.mxu0 0
    %591 = vmatpush1.bf16.msra.mxu0 0
    %592 = vmatprep.subr.bf16.mxu0 0
    %593 = vmatpush1.bf16.msra.mxu0 0
    %594 = vmatprep.subr.bf16.mxu0 0
    %595 = vmatpush1.bf16.msra.mxu0 0
    %596 = vmatprep.subr.bf16.mxu0 0
    %597 = vmatpush1.bf16.msra.mxu0 0
    %598 = vmatprep.subr.bf16.mxu0 0
    %599 = vmatpush1.bf16.msra.mxu0 0
    %600 = vmatprep.subr.bf16.mxu0 0
    %601 = vmatpush1.bf16.msra.mxu0 0
    %602 = vmatprep.subr.bf16.mxu0 0
    %603 = vmatpush1.bf16.msra.mxu0 0
    %604 = vmatprep.subr.bf16.mxu0 0
    %605 = vmatpush1.bf16.msra.mxu0 0
    %606 = vmatprep.subr.bf16.mxu0 0
    %607 = vmatpush1.bf16.msra.mxu0 0
    %608 = vmatprep.subr.bf16.mxu0 0
    %609 = vmatpush1.bf16.msra.mxu0 0
    %610 = vmatprep.mubr.bf16.mxu0 0
    %611 = vmatmul.mubr.bf16.gmra.mrb[0].mxu0 %v456
    %v612 = vpop.f32.mrb[0].mxu0
    %v613 = vadd.f32 %v573, %v612
    %v614 = vpop.f32.mrb[0].mxu0
    %v615 = vpop.f32.mrb[0].mxu0
    %v616 = vpop.f32.mrb[0].mxu0
    %617 = vdwg.mxu0
    %618 = vadd.xlane.f32.xlu0 %v613
    %v619 = vpop.xlane.xlu0 %618
    %v620 = vmul.f32 %v613, %v613
    %621 = vadd.xlane.f32.xlu0 %v620
    %v622 = vpop.xlane.xlu0 %621
    %v623 = vmul.f32 %v619, 0.01
    %v624 = vmul.f32 %v622, 0.01
    %v625 = vmul.f32 %v623, %v623
    %v626 = vsub.f32 %v624, %v625
    %v627 = vmax.f32 %v626, 0.0
    %v628 = vsub.f32 %v613, %v623
    %v629 = vadd.f32 %v627, 1e-05
    %v630 = vrsqrt.pop %v629
    %v631 = vmul.f32 %v628, %v630
    %v632 = vlaneseq
    %v633 = vshrl.u32 %v632, 7
    %v634 = vsub.s32 1, %v633
    %v635 = vrot.slane %v42, %v634
    %v636 = vmul.f32 %v631, %v635
    %v637 = vlaneseq
    %v638 = vshrl.u32 %v637, 7
    %v639 = vsub.s32 2, %v638
    %v640 = vrot.slane %v42, %v639
    %v641 = vadd.f32 %v636, %v640
    %v642 = vmax.f32 %v641, 0.0
    %v643 = vpack.c.bf16 %v642, %v642
    %v644 = vld [vmem:[%s3] sm:$0xf]
    %v645 = vld [vmem:[%s3 + $0x4] sm:$0xf]
    %v646 = vld [vmem:[%s3 + $0x8] sm:$0xf]
    %v647 = vld [vmem:[%s3 + $0xc] sm:$0xf]
    %v648 = vld [vmem:[%s3 + $0x10] sm:$0xf]
    %v649 = vld [vmem:[%s3 + $0x14] sm:$0xf]
    %v650 = vld [vmem:[%s3 + $0x18] sm:$0xf]
    %v651 = vld [vmem:[%s3 + $0x1c] sm:$0xf]
    %v652 = vld [vmem:[%s3 + $0x20] sm:$0xf]
    %v653 = vld [vmem:[%s3 + $0x24] sm:$0xf]
    %v654 = vld [vmem:[%s3 + $0x28] sm:$0xf]
    %v655 = vld [vmem:[%s3 + $0x2c] sm:$0xf]
    %v656 = vld [vmem:[%s3 + $0x30] sm:$0xf]
    %v657 = vld [vmem:[%s3 + $0x34] sm:$0xf]
    %v658 = vld [vmem:[%s3 + $0x38] sm:$0xf]
    %v659 = vld [vmem:[%s3 + $0x3c] sm:$0xf]
    %v660 = vlaneseq
    %v661 = vshrl.u32 %v660, 7
    %v662 = vsub.s32 3, %v661
    %v663 = vrot.slane %v42, %v662
    %v680 = vunpack.c.l.b16 %v644
    %v681 = vunpack.c.l.b16 %v645
    %v682 = vunpack.c.l.b16 %v646
    %v683 = vunpack.c.l.b16 %v647
    %v684 = vunpack.c.l.b16 %v648
    %v685 = vunpack.c.l.b16 %v649
    %v686 = vunpack.c.l.b16 %v650
    %v687 = vunpack.c.l.b16 %v651
    %v688 = vunpack.c.l.b16 %v652
    %v689 = vunpack.c.l.b16 %v653
    %v690 = vunpack.c.l.b16 %v654
    %v691 = vunpack.c.l.b16 %v655
    %v692 = vunpack.c.l.b16 %v656
    %v693 = vunpack.c.l.b16 %v657
    %v694 = vunpack.c.l.b16 %v658
    %v695 = vunpack.c.l.b16 %v659
    %v696 = vpack.c.b16 %v681, %v680
    %v697 = vpack.c.b16 %v683, %v682
    %v698 = vpack.c.b16 %v685, %v684
    %v699 = vpack.c.b16 %v687, %v686
    %v700 = vpack.c.b16 %v689, %v688
    %v701 = vpack.c.b16 %v691, %v690
    %v702 = vpack.c.b16 %v693, %v692
    %v703 = vpack.c.b16 %v695, %v694
    %712 = vmatprep.subr.bf16.mxu0 0
    %713 = vmatpush1.bf16.msra.mxu0 %v696
    %714 = vmatprep.subr.bf16.mxu0 0
    %715 = vmatpush1.bf16.msra.mxu0 %v697
    %716 = vmatprep.subr.bf16.mxu0 0
    %717 = vmatpush1.bf16.msra.mxu0 %v698
    %718 = vmatprep.subr.bf16.mxu0 0
    %719 = vmatpush1.bf16.msra.mxu0 %v699
    %720 = vmatprep.subr.bf16.mxu0 0
    %721 = vmatpush1.bf16.msra.mxu0 %v700
    %722 = vmatprep.subr.bf16.mxu0 0
    %723 = vmatpush1.bf16.msra.mxu0 %v701
    %724 = vmatprep.subr.bf16.mxu0 0
    %725 = vmatpush1.bf16.msra.mxu0 %v702
    %726 = vmatprep.subr.bf16.mxu0 0
    %727 = vmatpush1.bf16.msra.mxu0 %v703
    %728 = vmatprep.subr.bf16.mxu0 0
    %729 = vmatpush1.bf16.msra.mxu0 0
    %730 = vmatprep.subr.bf16.mxu0 0
    %731 = vmatpush1.bf16.msra.mxu0 0
    %732 = vmatprep.subr.bf16.mxu0 0
    %733 = vmatpush1.bf16.msra.mxu0 0
    %734 = vmatprep.subr.bf16.mxu0 0
    %735 = vmatpush1.bf16.msra.mxu0 0
    %736 = vmatprep.subr.bf16.mxu0 0
    %737 = vmatpush1.bf16.msra.mxu0 0
    %738 = vmatprep.subr.bf16.mxu0 0
    %739 = vmatpush1.bf16.msra.mxu0 0
    %740 = vmatprep.subr.bf16.mxu0 0
    %741 = vmatpush1.bf16.msra.mxu0 0
    %742 = vmatprep.subr.bf16.mxu0 0
    %743 = vmatpush1.bf16.msra.mxu0 0
    %744 = vmatprep.mubr.bf16.mxu0 0
    %745 = vmatmul.mubr.bf16.gmra.mrb[0].mxu0 %v643
    %v746 = vpop.f32.mrb[0].mxu0
    %v747 = vadd.f32 %v663, %v746
    %v748 = vpop.f32.mrb[0].mxu0
    %v749 = vpop.f32.mrb[0].mxu0
    %v750 = vpop.f32.mrb[0].mxu0
    %751 = vdwg.mxu0
    %752 = vadd.xlane.f32.xlu0 %v747
    %v753 = vpop.xlane.xlu0 %752
    %v754 = vmul.f32 %v747, %v747
    %755 = vadd.xlane.f32.xlu0 %v754
    %v756 = vpop.xlane.xlu0 %755
    %v757 = vmul.f32 %v753, 0.01
    %v758 = vmul.f32 %v756, 0.01
    %v759 = vmul.f32 %v757, %v757
    %v760 = vsub.f32 %v758, %v759
    %v761 = vmax.f32 %v760, 0.0
    %v762 = vsub.f32 %v747, %v757
    %v763 = vadd.f32 %v761, 1e-05
    %v764 = vrsqrt.pop %v763
    %v765 = vmul.f32 %v762, %v764
    %v766 = vlaneseq
    %v767 = vshrl.u32 %v766, 7
    %v768 = vsub.s32 4, %v767
    %v769 = vrot.slane %v42, %v768
    %v770 = vmul.f32 %v765, %v769
    %v771 = vlaneseq
    %v772 = vshrl.u32 %v771, 7
    %v773 = vsub.s32 5, %v772
    %v774 = vrot.slane %v42, %v773
    %v775 = vadd.f32 %v770, %v774
    %v776 = vmax.f32 %v775, 0.0
    %v777 = vpack.c.bf16 %v776, %v776
    %v778 = vld [vmem:[%s4] sm:$0xf]
    %v779 = vld [vmem:[%s4 + $0x4] sm:$0xf]
    %v780 = vld [vmem:[%s4 + $0x8] sm:$0xf]
    %v781 = vld [vmem:[%s4 + $0xc] sm:$0xf]
    %v782 = vld [vmem:[%s4 + $0x10] sm:$0xf]
    %v783 = vld [vmem:[%s4 + $0x14] sm:$0xf]
    %v784 = vld [vmem:[%s4 + $0x18] sm:$0xf]
    %v785 = vld [vmem:[%s4 + $0x1c] sm:$0xf]
    %v786 = vld [vmem:[%s4 + $0x20] sm:$0xf]
    %v787 = vld [vmem:[%s4 + $0x24] sm:$0xf]
    %v788 = vld [vmem:[%s4 + $0x28] sm:$0xf]
    %v789 = vld [vmem:[%s4 + $0x2c] sm:$0xf]
    %v790 = vld [vmem:[%s4 + $0x30] sm:$0xf]
    %v791 = vld [vmem:[%s4 + $0x34] sm:$0xf]
    %v792 = vld [vmem:[%s4 + $0x38] sm:$0xf]
    %v793 = vld [vmem:[%s4 + $0x3c] sm:$0xf]
    %v794 = vlaneseq
    %v795 = vshrl.u32 %v794, 7
    %v796 = vsub.s32 6, %v795
    %v797 = vrot.slane %v42, %v796
    %v814 = vunpack.c.l.b16 %v778
    %v815 = vunpack.c.l.b16 %v779
    %v816 = vunpack.c.l.b16 %v780
    %v817 = vunpack.c.l.b16 %v781
    %v818 = vunpack.c.l.b16 %v782
    %v819 = vunpack.c.l.b16 %v783
    %v820 = vunpack.c.l.b16 %v784
    %v821 = vunpack.c.l.b16 %v785
    %v822 = vunpack.c.l.b16 %v786
    %v823 = vunpack.c.l.b16 %v787
    %v824 = vunpack.c.l.b16 %v788
    %v825 = vunpack.c.l.b16 %v789
    %v826 = vunpack.c.l.b16 %v790
    %v827 = vunpack.c.l.b16 %v791
    %v828 = vunpack.c.l.b16 %v792
    %v829 = vunpack.c.l.b16 %v793
    %v830 = vpack.c.b16 %v815, %v814
    %v831 = vpack.c.b16 %v817, %v816
    %v832 = vpack.c.b16 %v819, %v818
    %v833 = vpack.c.b16 %v821, %v820
    %v834 = vpack.c.b16 %v823, %v822
    %v835 = vpack.c.b16 %v825, %v824
    %v836 = vpack.c.b16 %v827, %v826
    %v837 = vpack.c.b16 %v829, %v828
    %846 = vmatprep.subr.bf16.mxu0 0
    %847 = vmatpush1.bf16.msra.mxu0 %v830
    %848 = vmatprep.subr.bf16.mxu0 0
    %849 = vmatpush1.bf16.msra.mxu0 %v831
    %850 = vmatprep.subr.bf16.mxu0 0
    %851 = vmatpush1.bf16.msra.mxu0 %v832
    %852 = vmatprep.subr.bf16.mxu0 0
    %853 = vmatpush1.bf16.msra.mxu0 %v833
    %854 = vmatprep.subr.bf16.mxu0 0
    %855 = vmatpush1.bf16.msra.mxu0 %v834
    %856 = vmatprep.subr.bf16.mxu0 0
    %857 = vmatpush1.bf16.msra.mxu0 %v835
    %858 = vmatprep.subr.bf16.mxu0 0
    %859 = vmatpush1.bf16.msra.mxu0 %v836
    %860 = vmatprep.subr.bf16.mxu0 0
    %861 = vmatpush1.bf16.msra.mxu0 %v837
    %862 = vmatprep.subr.bf16.mxu0 0
    %863 = vmatpush1.bf16.msra.mxu0 0
    %864 = vmatprep.subr.bf16.mxu0 0
    %865 = vmatpush1.bf16.msra.mxu0 0
    %866 = vmatprep.subr.bf16.mxu0 0
    %867 = vmatpush1.bf16.msra.mxu0 0
    %868 = vmatprep.subr.bf16.mxu0 0
    %869 = vmatpush1.bf16.msra.mxu0 0
    %870 = vmatprep.subr.bf16.mxu0 0
    %871 = vmatpush1.bf16.msra.mxu0 0
    %872 = vmatprep.subr.bf16.mxu0 0
    %873 = vmatpush1.bf16.msra.mxu0 0
    %874 = vmatprep.subr.bf16.mxu0 0
    %875 = vmatpush1.bf16.msra.mxu0 0
    %876 = vmatprep.subr.bf16.mxu0 0
    %877 = vmatpush1.bf16.msra.mxu0 0
    %878 = vmatprep.mubr.bf16.mxu0 0
    %879 = vmatmul.mubr.bf16.gmra.mrb[0].mxu0 %v777
    %v880 = vpop.f32.mrb[0].mxu0
    %v881 = vadd.f32 %v797, %v880
    %v882 = vpop.f32.mrb[0].mxu0
    %v883 = vpop.f32.mrb[0].mxu0
    %v884 = vpop.f32.mrb[0].mxu0
    %885 = vdwg.mxu0
    %886 = vadd.xlane.f32.xlu0 %v881
    %v887 = vpop.xlane.xlu0 %886
    %v888 = vmul.f32 %v881, %v881
    %889 = vadd.xlane.f32.xlu0 %v888
    %v890 = vpop.xlane.xlu0 %889
    %v891 = vmul.f32 %v887, 0.01
    %v892 = vmul.f32 %v890, 0.01
    %v893 = vmul.f32 %v891, %v891
    %v894 = vsub.f32 %v892, %v893
    %v895 = vmax.f32 %v894, 0.0
    %v896 = vsub.f32 %v881, %v891
    %v897 = vadd.f32 %v895, 1e-05
    %v898 = vrsqrt.pop %v897
    %v899 = vmul.f32 %v896, %v898
    %v900 = vlaneseq
    %v901 = vshrl.u32 %v900, 7
    %v902 = vsub.s32 7, %v901
    %v903 = vrot.slane %v42, %v902
    %v904 = vmul.f32 %v899, %v903
    %v905 = vlaneseq
    %v906 = vshrl.u32 %v905, 7
    %v907 = vsub.s32 0, %v906
    %v908 = vrot.slane %v43, %v907
    %v909 = vadd.f32 %v904, %v908
    %v910 = vmax.f32 %v909, 0.0
    %v911 = vpack.c.bf16 %v910, %v910
    %v912 = vld [vmem:[%s5] sm:$0xf]
    %v913 = vld [vmem:[%s5 + $0x4] sm:$0xf]
    %v914 = vld [vmem:[%s5 + $0x8] sm:$0xf]
    %v915 = vld [vmem:[%s5 + $0xc] sm:$0xf]
    %v916 = vld [vmem:[%s5 + $0x10] sm:$0xf]
    %v917 = vld [vmem:[%s5 + $0x14] sm:$0xf]
    %v918 = vld [vmem:[%s5 + $0x18] sm:$0xf]
    %v919 = vld [vmem:[%s5 + $0x1c] sm:$0xf]
    %v920 = vld [vmem:[%s5 + $0x20] sm:$0xf]
    %v921 = vld [vmem:[%s5 + $0x24] sm:$0xf]
    %v922 = vld [vmem:[%s5 + $0x28] sm:$0xf]
    %v923 = vld [vmem:[%s5 + $0x2c] sm:$0xf]
    %v924 = vld [vmem:[%s5 + $0x30] sm:$0xf]
    %v925 = vld [vmem:[%s5 + $0x34] sm:$0xf]
    %v926 = vld [vmem:[%s5 + $0x38] sm:$0xf]
    %v927 = vld [vmem:[%s5 + $0x3c] sm:$0xf]
    %v928 = vlaneseq
    %v929 = vshrl.u32 %v928, 7
    %v930 = vsub.s32 1, %v929
    %v931 = vrot.slane %v43, %v930
    %v948 = vunpack.c.l.b16 %v912
    %v949 = vunpack.c.l.b16 %v913
    %v950 = vunpack.c.l.b16 %v914
    %v951 = vunpack.c.l.b16 %v915
    %v952 = vunpack.c.l.b16 %v916
    %v953 = vunpack.c.l.b16 %v917
    %v954 = vunpack.c.l.b16 %v918
    %v955 = vunpack.c.l.b16 %v919
    %v956 = vunpack.c.l.b16 %v920
    %v957 = vunpack.c.l.b16 %v921
    %v958 = vunpack.c.l.b16 %v922
    %v959 = vunpack.c.l.b16 %v923
    %v960 = vunpack.c.l.b16 %v924
    %v961 = vunpack.c.l.b16 %v925
    %v962 = vunpack.c.l.b16 %v926
    %v963 = vunpack.c.l.b16 %v927
    %v964 = vpack.c.b16 %v949, %v948
    %v965 = vpack.c.b16 %v951, %v950
    %v966 = vpack.c.b16 %v953, %v952
    %v967 = vpack.c.b16 %v955, %v954
    %v968 = vpack.c.b16 %v957, %v956
    %v969 = vpack.c.b16 %v959, %v958
    %v970 = vpack.c.b16 %v961, %v960
    %v971 = vpack.c.b16 %v963, %v962
    %980 = vmatprep.subr.bf16.mxu0 0
    %981 = vmatpush1.bf16.msra.mxu0 %v964
    %982 = vmatprep.subr.bf16.mxu0 0
    %983 = vmatpush1.bf16.msra.mxu0 %v965
    %984 = vmatprep.subr.bf16.mxu0 0
    %985 = vmatpush1.bf16.msra.mxu0 %v966
    %986 = vmatprep.subr.bf16.mxu0 0
    %987 = vmatpush1.bf16.msra.mxu0 %v967
    %988 = vmatprep.subr.bf16.mxu0 0
    %989 = vmatpush1.bf16.msra.mxu0 %v968
    %990 = vmatprep.subr.bf16.mxu0 0
    %991 = vmatpush1.bf16.msra.mxu0 %v969
    %992 = vmatprep.subr.bf16.mxu0 0
    %993 = vmatpush1.bf16.msra.mxu0 %v970
    %994 = vmatprep.subr.bf16.mxu0 0
    %995 = vmatpush1.bf16.msra.mxu0 %v971
    %996 = vmatprep.subr.bf16.mxu0 0
    %997 = vmatpush1.bf16.msra.mxu0 0
    %998 = vmatprep.subr.bf16.mxu0 0
    %999 = vmatpush1.bf16.msra.mxu0 0
    %1000 = vmatprep.subr.bf16.mxu0 0
    %1001 = vmatpush1.bf16.msra.mxu0 0
    %1002 = vmatprep.subr.bf16.mxu0 0
    %1003 = vmatpush1.bf16.msra.mxu0 0
    %1004 = vmatprep.subr.bf16.mxu0 0
    %1005 = vmatpush1.bf16.msra.mxu0 0
    %1006 = vmatprep.subr.bf16.mxu0 0
    %1007 = vmatpush1.bf16.msra.mxu0 0
    %1008 = vmatprep.subr.bf16.mxu0 0
    %1009 = vmatpush1.bf16.msra.mxu0 0
    %1010 = vmatprep.subr.bf16.mxu0 0
    %1011 = vmatpush1.bf16.msra.mxu0 0
    %1012 = vmatprep.mubr.bf16.mxu0 0
    %1013 = vmatmul.mubr.bf16.gmra.mrb[0].mxu0 %v911
    %v1014 = vpop.f32.mrb[0].mxu0
    %v1015 = vadd.f32 %v931, %v1014
    %v1016 = vpop.f32.mrb[0].mxu0
    %v1017 = vpop.f32.mrb[0].mxu0
    %v1018 = vpop.f32.mrb[0].mxu0
    %1019 = vdwg.mxu0
    %1020 = vst [vmem:[%s7] sm:$0xff] %v1015
    // Predicated region
    $region34: #{_forward.1} parent=1 // pred_check
      _
    $region35: #{_forward.1} parent=1 // pred_check_branch
      %1022 = sbr.rel (0) target = $region37
    $region36: #{_forward.1} parent=1 // pred_region
      _
    $region37: #{_forward.1} parent=1 // pred_fallthru
      _
    // Predicated region
    $region38: #{_forward.1} parent=1 // pred_check
      _
    $region39: #{_forward.1} parent=1 // pred_check_branch
      %1024 = sbr.rel (0) target = $region41
    $region40: #{_forward.1} parent=1 // pred_region
      _
    $region41: #{_forward.1} parent=1 // pred_fallthru
      _
    %1025 = vsyncpa [#allocation4], 1

</llo_original>
